<compile_context>
chip_gen: v6e
topology: v6e:2x2x1
jax: 0.10.0
libtpu: 0.0.40
codegen_flags: <defaults>
</compile_context>

<pallas_src>
import functools

import jax
import jax.numpy as jnp
from jax import lax
from jax.experimental import pallas as pl
from jax.experimental.pallas import tpu as pltpu

EPS = 1e-5
_VMEM_LIMIT = 48 * 1024 * 1024  # safe on v5e/v6e (128 MiB) and v7x (64 MiB)


def _round_up(x, m):
    return ((x + m - 1) // m) * m


def _cdiv(a, b):
    return (a + b - 1) // b


# --------------------------------------------------------------------------
# Resident path: each block holds whole rows; one pass, centered variance.
# --------------------------------------------------------------------------
def _inorm_kernel(x_ref, o_ref, *, true_hw):
    # x_ref: (TR, HW) tile; HW is the full (possibly unaligned) lane extent,
    # so the cross-lane reductions see exactly the valid pixels.  Rows beyond
    # the array (partial final block) compute garbage that is never written.
    x = x_ref[...].astype(jnp.float32)
    inv_n = jnp.float32(1.0 / true_hw)
    mean = jnp.sum(x, axis=-1, keepdims=True) * inv_n
    centered = x - mean
    var = jnp.sum(centered * centered, axis=-1, keepdims=True) * inv_n
    o_ref[...] = (centered * lax.rsqrt(var + EPS)).astype(o_ref.dtype)


def _normalize_resident(x2d, rows, hw, q, itemsize, block_bytes, dtype):
    hw_p = _round_up(hw, 128)  # physical lane footprint for sizing only

    # Row tile: as big as the block budget allows, never below the sublane
    # quantum, and split into >= 2 grid steps when possible so v7x's two
    # TensorCores both get work.
    tr_target = max(q, (block_bytes // (hw_p * itemsize)) // q * q)
    tr = min(tr_target, _round_up(rows, q))
    if rows >= 2 * q:
        tr = min(tr, _round_up(_cdiv(rows, 2), q))
    steps = _cdiv(rows, tr)

    kernel = functools.partial(_inorm_kernel, true_hw=hw)
    cost = pl.CostEstimate(
        flops=7 * rows * hw,
        transcendentals=rows,
        bytes_accessed=2 * rows * hw * itemsize,
    )

    return pl.pallas_call(
        kernel,
        out_shape=jax.ShapeDtypeStruct((rows, hw), dtype),
        grid_spec=pltpu.PrefetchScalarGridSpec(
            num_scalar_prefetch=0,
            grid=(steps,),
            in_specs=[pl.BlockSpec((tr, hw), lambda i: (i, 0))],
            out_specs=pl.BlockSpec((tr, hw), lambda i: (i, 0)),
        ),
        compiler_params=pltpu.CompilerParams(
            dimension_semantics=("parallel",),
            vmem_limit_bytes=_VMEM_LIMIT,
        ),
        cost_estimate=cost,
    )(x2d)


# --------------------------------------------------------------------------
# Chunked path for huge H*W: stats accumulation over HW chunks, then apply.
# --------------------------------------------------------------------------
def _stats_kernel(x_ref, mean_ref, rstd_ref, sum_sc, ss_sc, *, true_hw, thw):
    j = pl.program_id(1)

    @pl.when(j == 0)
    def _():
        sum_sc[...] = jnp.zeros_like(sum_sc)
        ss_sc[...] = jnp.zeros_like(ss_sc)

    x = x_ref[...].astype(jnp.float32)
    col = j * thw + lax.broadcasted_iota(jnp.int32, x.shape, 1)
    x = jnp.where(col < true_hw, x, 0.0)
    sum_sc[...] += jnp.sum(x, axis=-1, keepdims=True)
    ss_sc[...] += jnp.sum(x * x, axis=-1, keepdims=True)

    @pl.when(j == pl.num_programs(1) - 1)
    def _():
        inv_n = jnp.float32(1.0 / true_hw)
        mean = sum_sc[...] * inv_n
        var = jnp.maximum(ss_sc[...] * inv_n - mean * mean, 0.0)
        mean_ref[...] = mean
        rstd_ref[...] = lax.rsqrt(var + EPS)


def _apply_kernel(x_ref, mean_ref, rstd_ref, o_ref):
    x = x_ref[...].astype(jnp.float32)
    o_ref[...] = ((x - mean_ref[...]) * rstd_ref[...]).astype(o_ref.dtype)


def _normalize_chunked(x2d, rows, hw, q, itemsize, block_bytes, dtype):
    hw_p = _round_up(hw, 128)
    tr = q
    thw = max(128, (block_bytes // (tr * itemsize)) // 128 * 128)
    thw = min(thw, hw_p)
    row_steps = _cdiv(rows, tr)
    hw_steps = _cdiv(hw, thw)

    stats_kernel = functools.partial(_stats_kernel, true_hw=hw, thw=thw)
    stats_cost = pl.CostEstimate(
        flops=4 * rows * hw,
        transcendentals=rows,
        bytes_accessed=rows * hw * itemsize,
    )
    mean, rstd = pl.pallas_call(
        stats_kernel,
        out_shape=(
            jax.ShapeDtypeStruct((rows, 1), jnp.float32),
            jax.ShapeDtypeStruct((rows, 1), jnp.float32),
        ),
        grid_spec=pltpu.PrefetchScalarGridSpec(
            num_scalar_prefetch=0,
            grid=(row_steps, hw_steps),
            in_specs=[pl.BlockSpec((tr, thw), lambda i, j: (i, j))],
            out_specs=(
                pl.BlockSpec((tr, 1), lambda i, j: (i, 0)),
                pl.BlockSpec((tr, 1), lambda i, j: (i, 0)),
            ),
            scratch_shapes=[
                pltpu.VMEM((tr, 1), jnp.float32),
                pltpu.VMEM((tr, 1), jnp.float32),
            ],
        ),
        compiler_params=pltpu.CompilerParams(
            dimension_semantics=("parallel", "arbitrary"),
            vmem_limit_bytes=_VMEM_LIMIT,
        ),
        cost_estimate=stats_cost,
    )(x2d)

    apply_cost = pl.CostEstimate(
        flops=2 * rows * hw,
        transcendentals=0,
        bytes_accessed=2 * rows * hw * itemsize,
    )
    return pl.pallas_call(
        _apply_kernel,
        out_shape=jax.ShapeDtypeStruct((rows, hw), dtype),
        grid_spec=pltpu.PrefetchScalarGridSpec(
            num_scalar_prefetch=0,
            grid=(row_steps, hw_steps),
            in_specs=[
                pl.BlockSpec((tr, thw), lambda i, j: (i, j)),
                pl.BlockSpec((tr, 1), lambda i, j: (i, 0)),
                pl.BlockSpec((tr, 1), lambda i, j: (i, 0)),
            ],
            out_specs=pl.BlockSpec((tr, thw), lambda i, j: (i, j)),
        ),
        compiler_params=pltpu.CompilerParams(
            dimension_semantics=("parallel", "parallel"),
            vmem_limit_bytes=_VMEM_LIMIT,
        ),
        cost_estimate=apply_cost,
    )(x2d, mean, rstd)


# --------------------------------------------------------------------------
# Public wrapper
# --------------------------------------------------------------------------
@functools.partial(jax.jit, static_argnames=("block_bytes",))
def sequence_instance_norm_2d(v, block_bytes=4 * 1024 * 1024):
    """v: (B, S, C, H, W) -> same shape, instance-normalized over (H, W)."""
    B, S, C, H, W = v.shape
    rows = B * S * C
    hw = H * W
    x2d = v.reshape(rows, hw)  # contiguous reshape: no copy

    itemsize = jnp.dtype(v.dtype).itemsize
    q = max(8, 32 // itemsize)  # sublane quantum: 8 (f32), 16 (bf16), 32 (i8)
    hw_p = _round_up(hw, 128)

    # If even a minimum-height tile blows the block budget (huge H*W), take the
    # HW-chunked two-pass path so we never exceed VMEM.
    if q * hw_p * itemsize > block_bytes:
        out2d = _normalize_chunked(x2d, rows, hw, q, itemsize, block_bytes, v.dtype)
    else:
        out2d = _normalize_resident(x2d, rows, hw, q, itemsize, block_bytes, v.dtype)

    return out2d.reshape(B, S, C, H, W)


def _reference(v):
    """Pure-JAX reference mirroring torch.nn.InstanceNorm2d under seq_op."""
    x = v.astype(jnp.float32)
    mean = jnp.mean(x, axis=(-2, -1), keepdims=True)
    var = jnp.mean((x - mean) ** 2, axis=(-2, -1), keepdims=True)
    return ((x - mean) / jnp.sqrt(var + EPS)).astype(v.dtype)


if __name__ == "__main__":
    key = jax.random.PRNGKey(0)
    B, S, C, H, W = 2, 8, 4, 16, 16  # embed_dim = C = 4
    v = jax.random.normal(key, (B, S, C, H, W), dtype=jnp.float32)

    out = jax.block_until_ready(sequence_instance_norm_2d(v))
    ref = _reference(v)
    assert out.shape == v.shape
    assert jnp.allclose(out, ref, atol=3e-5, rtol=3e-5), "mismatch vs reference"

    # Unaligned shape (rows % 8 != 0, hw % 128 != 0): exercises the masked
    # partial-block edges with no wrapper-side pad/slice.
    v2 = jax.random.normal(jax.random.PRNGKey(1), (1, 3, 5, 7, 9),
                           dtype=jnp.float32)
    out2 = jax.block_until_ready(sequence_instance_norm_2d(v2))
    assert out2.shape == v2.shape
    assert jnp.allclose(out2, _reference(v2), atol=3e-5, rtol=3e-5), \
        "mismatch vs reference (unaligned path)"

    # Force the HW-chunked (large-H*W) fallback with a tiny block budget.
    v3 = jax.random.normal(jax.random.PRNGKey(2), (1, 2, 3, 16, 24),
                           dtype=jnp.float32)
    out3 = jax.block_until_ready(sequence_instance_norm_2d(v3, block_bytes=8192))
    assert out3.shape == v3.shape
    assert jnp.allclose(out3, _reference(v3), atol=3e-5, rtol=3e-5), \
        "mismatch vs reference (chunked path)"

    # bf16 input (sublane quantum 16).
    v4 = jax.random.normal(jax.random.PRNGKey(3), (B, S, C, H, W),
                           dtype=jnp.bfloat16)
    out4 = jax.block_until_ready(sequence_instance_norm_2d(v4))
    assert out4.dtype == jnp.bfloat16
    assert jnp.allclose(out4.astype(jnp.float32),
                        _reference(v4).astype(jnp.float32),
                        atol=5e-2, rtol=5e-2), "mismatch vs reference (bf16)"

    print("KERNEL_OK")
</pallas_src>

<mosaic_0001>
module attributes {stable_mosaic.version = 11 : i64} {
  func.func @_inorm_kernel(%arg0: i32, %arg1: memref<32x256xf32, #tpu.memory_space<vmem>>, %arg2: memref<32x256xf32, #tpu.memory_space<vmem>>) attributes {dimension_semantics = [#tpu.dimension_semantics<parallel>], iteration_bounds = array<i64: 2>, scalar_prefetch = 0 : i64, scratch_operands = 0 : i64, tpu.core_type = #tpu.core_type<tc>, window_params = [{transform_indices = @transform_0, window_bounds = array<i64: 32, 256>}, {transform_indices = @transform_1, window_bounds = array<i64: 32, 256>}]} {
    %c0 = arith.constant 0 : index
    %c0_0 = arith.constant 0 : index
    %0 = vector.load %arg1[%c0, %c0_0] : memref<32x256xf32, #tpu.memory_space<vmem>>, vector<32x256xf32>
    %cst = arith.constant dense<0.000000e+00> : vector<32xf32>
    %1 = vector.multi_reduction <add>, %0, %cst [1] : vector<32x256xf32> to vector<32xf32>
    %2 = vector.shape_cast %1 : vector<32xf32> to vector<32x1xf32>
    %cst_1 = arith.constant 3.906250e-03 : f32
    %3 = vector.broadcast %cst_1 : f32 to vector<32x1xf32>
    %4 = arith.mulf %2, %3 : vector<32x1xf32>
    %5 = vector.broadcast %4 : vector<32x1xf32> to vector<32x256xf32>
    %6 = arith.subf %0, %5 : vector<32x256xf32>
    %7 = arith.mulf %6, %6 : vector<32x256xf32>
    %cst_2 = arith.constant dense<0.000000e+00> : vector<32xf32>
    %8 = vector.multi_reduction <add>, %7, %cst_2 [1] : vector<32x256xf32> to vector<32xf32>
    %9 = vector.shape_cast %8 : vector<32xf32> to vector<32x1xf32>
    %cst_3 = arith.constant 3.906250e-03 : f32
    %10 = vector.broadcast %cst_3 : f32 to vector<32x1xf32>
    %11 = arith.mulf %9, %10 : vector<32x1xf32>
    %cst_4 = arith.constant 9.99999974E-6 : f32
    %12 = vector.broadcast %cst_4 : f32 to vector<32x1xf32>
    %13 = arith.addf %11, %12 : vector<32x1xf32>
    %14 = math.rsqrt %13 : vector<32x1xf32>
    %15 = vector.broadcast %14 : vector<32x1xf32> to vector<32x256xf32>
    %16 = arith.mulf %6, %15 : vector<32x256xf32>
    %c0_5 = arith.constant 0 : index
    %c0_6 = arith.constant 0 : index
    %17 = vector.load %arg2[%c0_5, %c0_6] : memref<32x256xf32, #tpu.memory_space<vmem>>, vector<32x256xf32>
    tpu.vector_store %arg2[%c0_5, %c0_6], %16 {strides = array<i32>} : memref<32x256xf32, #tpu.memory_space<vmem>>, vector<32x256xf32>,
    return
  }
  func.func @transform_0(%arg0: i32) -> (i32, i32) {
    %c0_i32 = arith.constant 0 : i32
    %c0_i32_0 = arith.constant 0 : i32
    return %arg0, %c0_i32 : i32, i32
  }
  func.func @transform_1(%arg0: i32) -> (i32, i32) {
    %c0_i32 = arith.constant 0 : i32
    %c0_i32_0 = arith.constant 0 : i32
    return %arg0, %c0_i32 : i32, i32
  }
}

</mosaic_0001>

<llo_original>
// kernel: sequence_instance_norm_2d.1
$region0: #{sequence_instance_norm_2d.1}
  #allocation0 [shape = 'u32[]', space=smem, size = 0x4, offset = 0x4, fixed_abs, tag = 'smem constant byte address 0x4 - core index']
  #allocation1 [shape = 'u32[144,128]{1,0:T(1,128)}', space=vmem, size = 0x12000, scoped, tag = 'internal scratch']
  %s0 = inlined_call_operand.vmem [shape: f32[64,256], index: 0, kind: input, shape index: {}]
  %s1 = inlined_call_operand.vmem [shape: f32[64,256], index: 1, kind: output, shape index: {}]
  %s2 = sld [smem:[#allocation0]]
  $region37: #{sequence_instance_norm_2d.1} parent=0
    _
  %s4 = ssub.s32 1, %s2
  %s5 = scalar_select 0, %s4, %s2
  loop: start=0, step=1, limit=4
  $region2: #{sequence_instance_norm_2d.1} parent=0 // loop_pre_header
    _
  $region3: #{sequence_instance_norm_2d.1} parent=0 // loop_header
    %s7 = sphi 0, %s11
    %p8 = scmp.ge.s32.totalorder %s7, 4
    %s17 = sphi 0, %s19
    %s20 = sphi 0, %s17
    %s21 = sphi 0, %s20
    %s37 = sphi 0, %s21
    %s43 = sphi 0, %s45
    %s46 = sphi 0, %s43
    %s47 = sphi 0, %s46
    %s63 = sphi 0, %s47
  $region4: #{sequence_instance_norm_2d.1} parent=0 // loop_header_branch
    %10 = sbr.rel (%p8) target = $region8
  $region5: #{sequence_instance_norm_2d.1} parent=0 // loop_body
    %s12 = ssub.s32 %s7, 1
    %s13 = ssub.s32 %s7, 2
    %s14 = sadd.s32 %s7, 1
    %s15 = ssub.s32 %s7, %s14
    %p16 = scmp.eq.s32.totalorder %s15, 0
    %s18 = sadd.s32 %s17, 1
    %s19 = scalar_select %p16, %s17, %s18
    %p22 = pneg %p16
    %p23 = scmp.eq.s32.totalorder %s7, 1
    %p24 = por %p22, %p23
    %p25 = scmp.ne.s32.totalorder %s17, %s20
    %p26 = scmp.eq.s32.totalorder %s7, 0
    %p27 = por %p25, %p26
    %p28 = scmp.ne.s32.totalorder %s17, %s20
    %p29 = scmp.eq.s32.totalorder %s12, 1
    %p30 = por %p28, %p29
    %p31 = scmp.ne.s32.totalorder %s20, %s21
    %p32 = scmp.eq.s32.totalorder %s12, 0
    %p33 = por %p31, %p32
    %p34 = scmp.ne.s32.totalorder %s20, %s21
    %p35 = scmp.eq.s32.totalorder %s13, 1
    %p36 = por %p34, %p35
    %p38 = scmp.ne.s32.totalorder %s21, %s37
    %p39 = scmp.eq.s32.totalorder %s13, 0
    %p40 = por %p38, %p39
    %s41 = ssub.s32 %s7, %s14
    %p42 = scmp.eq.s32.totalorder %s41, 0
    %s44 = sadd.s32 %s43, 1
    %s45 = scalar_select %p42, %s43, %s44
    %p48 = pneg %p42
    %p49 = scmp.eq.s32.totalorder %s7, 1
    %p50 = por %p48, %p49
    %p51 = scmp.ne.s32.totalorder %s43, %s46
    %p52 = scmp.eq.s32.totalorder %s7, 0
    %p53 = por %p51, %p52
    %p54 = scmp.ne.s32.totalorder %s43, %s46
    %p55 = scmp.eq.s32.totalorder %s12, 1
    %p56 = por %p54, %p55
    %p57 = scmp.ne.s32.totalorder %s46, %s47
    %p58 = scmp.eq.s32.totalorder %s12, 0
    %p59 = por %p57, %p58
    %p60 = scmp.ne.s32.totalorder %s46, %s47
    %p61 = scmp.eq.s32.totalorder %s13, 1
    %p62 = por %p60, %p61
    %p64 = scmp.ne.s32.totalorder %s47, %s63
    %p65 = scmp.eq.s32.totalorder %s13, 0
    %p66 = por %p64, %p65
    %p67 = scmp.le.s32.totalorder 1, %s7
    %p68 = scmp.lt.s32.totalorder %s7, 3
    %p69 = pnand %p67, %p68
    %p70 = pneg %p69
    // Predicated region
    $region9: #{sequence_instance_norm_2d.1} parent=5 // pred_check
      _
    $region10: #{sequence_instance_norm_2d.1} parent=5 // pred_check_branch
      %72 = sbr.rel (%p69) target = $region12
    $region11: #{sequence_instance_norm_2d.1} parent=5 // pred_region
      %s73 = ssub.s32 %s7, 1
    $region12: #{sequence_instance_norm_2d.1} parent=5 // pred_fallthru
      _
    %p74 = scmp.lt.s32.totalorder %s7, 2
    // Predicated region
    $region13: #{sequence_instance_norm_2d.1} parent=5 // pred_check
      %p75 = pneg %p74
    $region14: #{sequence_instance_norm_2d.1} parent=5 // pred_check_branch
      %77 = sbr.rel (%p75) target = $region16
    $region15: #{sequence_instance_norm_2d.1} parent=5 // pred_region
      // Predicated region
      $region17: #{sequence_instance_norm_2d.1} parent=15 // pred_check
        %p78 = pneg %p27
      $region18: #{sequence_instance_norm_2d.1} parent=15 // pred_check_branch
        %80 = sbr.rel (%p78) target = $region20
      $region19: #{sequence_instance_norm_2d.1} parent=15 // pred_region
        %s81 = smul.u32 4, %s7
        %p82 = scmp.lt.s32.totalorder %s81, 7
        %s83 = scalar_select %p82, %s81, 7
        %s84 = smul.addr %s83, 2
        %s85 = smul.addr %s84, 8
        %s86 = scalar_lea.vmem %s0, %s85
        %s87 = smul.u32 4, %s7
      $region20: #{sequence_instance_norm_2d.1} parent=15 // pred_fallthru
        _
    $region16: #{sequence_instance_norm_2d.1} parent=5 // pred_fallthru
      _
    %p88 = scmp.le.s32.totalorder 1, %s7
    %p89 = scmp.lt.s32.totalorder %s7, 3
    %p90 = pnand %p88, %p89
    %p91 = pneg %p90
    // Predicated region
    $region21: #{sequence_instance_norm_2d.1} parent=5 // pred_check
      _
    $region22: #{sequence_instance_norm_2d.1} parent=5 // pred_check_branch
      %93 = sbr.rel (%p90) target = $region24
    $region23: #{sequence_instance_norm_2d.1} parent=5 // pred_region
      %s94 = ssub.s32 %s7, 1
      %s95 = smul.u32 4, %s12
      %p96 = scmp.lt.s32.totalorder %s95, 7
      %s97 = scalar_select %p96, %s95, 7
      %s98 = smul.addr %s97, 2
      %s99 = smul.addr %s98, 8
      %s100 = scalar_lea.vmem %s0, %s99
      %p101 = pneg %p33
      %p102 = pneg %p30
      %p103 = pneg %p59
      %p104 = pneg %p56
      %s105 = smul.u32 4, %s12
      %p106 = scmp.lt.s32.totalorder %s105, 7
      %s107 = scalar_select %p106, %s105, 7
      %s108 = smul.addr %s107, 2
      %s109 = smul.addr %s108, 8
      %s110 = scalar_lea.vmem %s1, %s109
      %s111 = smul.u32 4, %s12
      %p112 = scmp.lt.s32.totalorder %s111, 7
      %s113 = scalar_select %p112, %s111, 7
      %s114 = smul.addr %s113, 2
      %s115 = smul.addr %s114, 8
      %s116 = scalar_lea.vmem %s0, %s115
      %s117 = smul.u32 4, %s12
      %s118 = smul.u32 4, %s12
      %p119 = scmp.lt.s32.totalorder %s118, 7
      %s120 = scalar_select %p119, %s118, 7
      %s121 = smul.addr %s120, 2
      %s122 = smul.addr %s121, 8
      %s123 = scalar_lea.vmem %s1, %s122
      %s124 = smul.u32 4, %s12
      %v125 = vld [vmem:[%s116] sm:$0xff]
      %v126 = vld [vmem:[%s116 + $0x8] sm:$0xff]
      %v127 = vld [vmem:[%s116 + $0x10] sm:$0xff]
      %v128 = vld [vmem:[%s116 + $0x18] sm:$0xff]
      %v129 = vld [vmem:[%s116 + $0x20] sm:$0xff]
      %v130 = vld [vmem:[%s116 + $0x28] sm:$0xff]
      %v131 = vld [vmem:[%s116 + $0x30] sm:$0xff]
      %v132 = vld [vmem:[%s116 + $0x38] sm:$0xff]
      %v133 = vadd.f32 %v125, %v126
      %134 = vadd.xlane.f32.xlu0 %v133
      %v135 = vpop.xlane.xlu0 %134
      %v136 = vadd.f32 %v127, %v128
      %137 = vadd.xlane.f32.xlu0 %v136
      %v138 = vpop.xlane.xlu0 %137
      %v139 = vadd.f32 %v129, %v130
      %140 = vadd.xlane.f32.xlu0 %v139
      %v141 = vpop.xlane.xlu0 %140
      %v142 = vadd.f32 %v131, %v132
      %143 = vadd.xlane.f32.xlu0 %v142
      %v144 = vpop.xlane.xlu0 %143
      %v145 = vmul.f32 %v135, 0.00390625
      %v146 = vmul.f32 %v138, 0.00390625
      %v147 = vmul.f32 %v141, 0.00390625
      %v148 = vmul.f32 %v144, 0.00390625
      %v149 = vsub.f32 %v125, %v145
      %v150 = vsub.f32 %v126, %v145
      %v151 = vsub.f32 %v127, %v146
      %v152 = vsub.f32 %v128, %v146
      %v153 = vsub.f32 %v129, %v147
      %v154 = vsub.f32 %v130, %v147
      %v155 = vsub.f32 %v131, %v148
      %v156 = vsub.f32 %v132, %v148
      %v157 = vmul.f32 %v149, %v149
      %v158 = vmul.f32 %v150, %v150
      %v159 = vmul.f32 %v151, %v151
      %v160 = vmul.f32 %v152, %v152
      %v161 = vmul.f32 %v153, %v153
      %v162 = vmul.f32 %v154, %v154
      %v163 = vmul.f32 %v155, %v155
      %v164 = vmul.f32 %v156, %v156
      %v165 = vadd.f32 %v157, %v158
      %166 = vadd.xlane.f32.xlu0 %v165
      %v167 = vpop.xlane.xlu0 %166
      %v168 = vadd.f32 %v159, %v160
      %169 = vadd.xlane.f32.xlu0 %v168
      %v170 = vpop.xlane.xlu0 %169
      %v171 = vadd.f32 %v161, %v162
      %172 = vadd.xlane.f32.xlu0 %v171
      %v173 = vpop.xlane.xlu0 %172
      %v174 = vadd.f32 %v163, %v164
      %175 = vadd.xlane.f32.xlu0 %v174
      %v176 = vpop.xlane.xlu0 %175
      %v177 = vmul.f32 %v167, 0.00390625
      %v178 = vmul.f32 %v170, 0.00390625
      %v179 = vmul.f32 %v173, 0.00390625
      %v180 = vmul.f32 %v176, 0.00390625
      %v181 = vadd.f32 %v177, 1e-05
      %v182 = vadd.f32 %v178, 1e-05
      %v183 = vadd.f32 %v179, 1e-05
      %v184 = vadd.f32 %v180, 1e-05
      %v185 = vrsqrt.pop %v181
      %v186 = vrsqrt.pop %v182
      %v187 = vrsqrt.pop %v183
      %v188 = vrsqrt.pop %v184
      %v189 = vmul.f32 %v149, %v185
      %v190 = vmul.f32 %v150, %v185
      %v191 = vmul.f32 %v151, %v186
      %v192 = vmul.f32 %v152, %v186
      %v193 = vmul.f32 %v153, %v187
      %v194 = vmul.f32 %v154, %v187
      %v195 = vmul.f32 %v155, %v188
      %v196 = vmul.f32 %v156, %v188
      %197 = vst [vmem:[%s123] sm:$0xff] %v189
      %198 = vst [vmem:[%s123 + $0x8] sm:$0xff] %v190
      %199 = vst [vmem:[%s123 + $0x10] sm:$0xff] %v191
      %200 = vst [vmem:[%s123 + $0x18] sm:$0xff] %v192
      %201 = vst [vmem:[%s123 + $0x20] sm:$0xff] %v193
      %202 = vst [vmem:[%s123 + $0x28] sm:$0xff] %v194
      %203 = vst [vmem:[%s123 + $0x30] sm:$0xff] %v195
      %204 = vst [vmem:[%s123 + $0x38] sm:$0xff] %v196
      %s205 = smul.u32 4, %s12
      %p206 = scmp.lt.s32.totalorder %s205, 7
      %s207 = scalar_select %p206, %s205, 7
      %s208 = smul.addr %s207, 2
      %s209 = smul.addr %s208, 8
      %s210 = scalar_lea.vmem %s1, %s209
      // Predicated region
      $region25: #{sequence_instance_norm_2d.1} parent=23 // pred_check
        %p211 = pneg %p56
      $region26: #{sequence_instance_norm_2d.1} parent=23 // pred_check_branch
        %213 = sbr.rel (%p211) target = $region28
      $region27: #{sequence_instance_norm_2d.1} parent=23 // pred_region
        %s214 = smul.u32 4, %s12
      $region28: #{sequence_instance_norm_2d.1} parent=23 // pred_fallthru
        _
    $region24: #{sequence_instance_norm_2d.1} parent=5 // pred_fallthru
      _
    %p215 = scmp.le.s32.totalorder 2, %s7
    // Predicated region
    $region29: #{sequence_instance_norm_2d.1} parent=5 // pred_check
      %p216 = pneg %p215
    $region30: #{sequence_instance_norm_2d.1} parent=5 // pred_check_branch
      %218 = sbr.rel (%p216) target = $region32
    $region31: #{sequence_instance_norm_2d.1} parent=5 // pred_region
      %s219 = ssub.s32 %s7, 2
      // Predicated region
      $region33: #{sequence_instance_norm_2d.1} parent=31 // pred_check
        %p220 = pneg %p62
      $region34: #{sequence_instance_norm_2d.1} parent=31 // pred_check_branch
        %222 = sbr.rel (%p220) target = $region36
      $region35: #{sequence_instance_norm_2d.1} parent=31 // pred_region
        %s223 = smul.u32 4, %s13
        %p224 = scmp.lt.s32.totalorder %s223, 7
        %s225 = scalar_select %p224, %s223, 7
        %s226 = smul.addr %s225, 2
        %s227 = smul.addr %s226, 8
        %s228 = scalar_lea.vmem %s1, %s227
      $region36: #{sequence_instance_norm_2d.1} parent=31 // pred_fallthru
        _
    $region32: #{sequence_instance_norm_2d.1} parent=5 // pred_fallthru
      _
  $region6: #{sequence_instance_norm_2d.1} parent=0 // loop_footer
    %s11 = sadd.s32 1, %s7
  $region7: #{sequence_instance_norm_2d.1} parent=0 // loop_footer_branch
    %6 = sbr.rel target = $region3
  $region8: #{sequence_instance_norm_2d.1} parent=0 // loop_exit
    _

</llo_original>
